<compile_context>
chip_gen: v6e
topology: v6e:2x2x1
jax: 0.10.0
libtpu: 0.0.40
codegen_flags: <defaults>
</compile_context>

<pallas_src>
import jax
import jax.numpy as jnp
from jax.experimental import pallas as pl
from jax.experimental.pallas import tpu as pltpu

_EPS = 1e-12                              # F.normalize default eps
_LANE = 128                               # TPU lane width
_TILE_BUDGET_BYTES = 32 * 1024 * 1024     # live-VMEM budget used to size row tiles
_VMEM_LIMIT_BYTES = 48 * 1024 * 1024      # scoped-VMEM limit, safe on v5e/v6e/v7x
_MAX_ROW_TILE = 1024


def _round_up(x, m):
    return ((x + m - 1) // m) * m


def _make_normalize_concat_kernel(n_inputs):
    """L2-normalize each [rows, C_i] input along channels and write it into the
    corresponding lane-aligned segment of the concatenated output tile."""

    def kernel(*refs):
        out_ref = refs[n_inputs]
        off = 0
        for i in range(n_inputs):
            c = refs[i].shape[1]                       # padded to 128 multiple
            x = refs[i][...].astype(jnp.float32)
            # ||x||_2 over channels; inverse is computed only on the small
            # [rows, 1] vector (EUP), then broadcast-multiplied on the VALU.
            ssq = jnp.sum(x * x, axis=1, keepdims=True)
            inv = 1.0 / jnp.maximum(jnp.sqrt(ssq), _EPS)
            # 128-aligned, full-lane (unmasked) store per segment.
            out_ref[:, off:off + c] = (x * inv).astype(out_ref.dtype)
            off += c

    return kernel


def reid_head_eval_feats(*feats, row_tile=None):
    """Pallas implementation of ReIDHead eval feats:
        cat([l2_normalize(f, axis=1) for f in feats], axis=1)
    Each f: [R, C_i]  ->  output [R, sum(C_i)].
    """
    assert len(feats) >= 1
    R = feats[0].shape[0]
    for f in feats:
        assert f.ndim == 2 and f.shape[0] == R

    out_dtype = jnp.result_type(*[f.dtype for f in feats])
    in_bytes = max(jnp.dtype(f.dtype).itemsize for f in feats)
    out_bytes = jnp.dtype(out_dtype).itemsize
    # f32 rows tile on (8, 128); packed 16-bit dtypes tile on (16, 128).
    sublane = 8 if min(in_bytes, out_bytes) >= 4 else 16

    # Pad each channel segment to a multiple of 128 lanes so all stores inside
    # the kernel are lane-dense / unmasked (zero pad channels don't change the
    # L2 norm).  Real BSL channels (256, 2048) need no padding.
    c_orig = [f.shape[1] for f in feats]
    c_pads = [_round_up(c, _LANE) for c in c_orig]
    padded = [f if cp == c else jnp.pad(f, ((0, 0), (0, cp - c)))
              for f, c, cp in zip(feats, c_orig, c_pads)]
    c_total = sum(c_pads)

    # Row tile: as many rows as fit the VMEM budget (double-buffered inputs and
    # output plus f32 temps), capped, then rebalanced across blocks so the last
    # block carries minimal padding.
    if row_tile is None:
        per_row = c_total * (2 * in_bytes + 2 * out_bytes + 2 * 4)
        row_tile = max(_TILE_BUDGET_BYTES // per_row, sublane)
    row_tile = min(int(row_tile), _MAX_ROW_TILE, _round_up(R, sublane))
    row_tile = max((row_tile // sublane) * sublane, sublane)
    n_blocks = pl.cdiv(R, row_tile)
    row_tile = _round_up(pl.cdiv(R, n_blocks), sublane)
    r_pad = n_blocks * row_tile

    if r_pad != R:
        padded = [jnp.pad(f, ((0, r_pad - R), (0, 0))) for f in padded]

    kernel = _make_normalize_concat_kernel(len(padded))
    out_pad = pl.pallas_call(
        kernel,
        out_shape=jax.ShapeDtypeStruct((r_pad, c_total), out_dtype),
        grid_spec=pltpu.PrefetchScalarGridSpec(
            num_scalar_prefetch=0,
            grid=(n_blocks,),
            in_specs=[pl.BlockSpec((row_tile, cp), lambda i: (i, 0))
                      for cp in c_pads],
            out_specs=pl.BlockSpec((row_tile, c_total), lambda i: (i, 0)),
        ),
        compiler_params=pltpu.CompilerParams(
            dimension_semantics=("parallel",),
            vmem_limit_bytes=_VMEM_LIMIT_BYTES,
        ),
    )(*padded)

    # Strip padding.  In the realistic ReID case (lane-aligned channels,
    # tile-aligned R) this is a no-op and the kernel output is returned as-is.
    if all(cp == c for cp, c in zip(c_pads, c_orig)):
        return out_pad if r_pad == R else out_pad[:R]
    pieces, off = [], 0
    for c, cp in zip(c_orig, c_pads):
        pieces.append(out_pad[:R, off:off + c])
        off += cp
    return jnp.concatenate(pieces, axis=1)


def _reference(*feats):
    """Pure-JAX reference mirroring F.normalize(dim=1) + torch.cat(dim=1)."""
    def norm(x):
        x32 = x.astype(jnp.float32)
        n = jnp.sqrt(jnp.sum(x32 * x32, axis=1, keepdims=True))
        return (x32 / jnp.maximum(n, _EPS)).astype(x.dtype)
    return jnp.concatenate([norm(f) for f in feats], axis=1)


if __name__ == "__main__":
    key = jax.random.PRNGKey(0)
    k1, k2 = jax.random.split(key)

    # Small demo shapes: 16 ROIs; two extractor outputs ('C4', 'C5') with
    # 32 / 64 channels (real BSL uses 256 / 2048, already lane-aligned).
    R, C1, C2 = 16, 32, 64
    feat_c4 = jax.random.normal(k1, (R, C1), dtype=jnp.float32)
    feat_c5 = jax.random.normal(k2, (R, C2), dtype=jnp.float32)

    feats = reid_head_eval_feats(feat_c4, feat_c5)
    feats = jax.block_until_ready(feats)

    ref = _reference(feat_c4, feat_c5)
    assert feats.shape == (R, C1 + C2)
    assert jnp.allclose(feats, ref, atol=1e-5, rtol=1e-5)

    print("KERNEL_OK")
</pallas_src>

<mosaic_0001>
module attributes {stable_mosaic.version = 11 : i64} {
  func.func @kernel(%arg0: i32, %arg1: memref<16x128xf32, #tpu.memory_space<vmem>>, %arg2: memref<16x128xf32, #tpu.memory_space<vmem>>, %arg3: memref<16x256xf32, #tpu.memory_space<vmem>>) attributes {dimension_semantics = [#tpu.dimension_semantics<parallel>], iteration_bounds = array<i64: 1>, scalar_prefetch = 0 : i64, scratch_operands = 0 : i64, tpu.core_type = #tpu.core_type<tc>, window_params = [{transform_indices = @transform_0, window_bounds = array<i64: 16, 128>}, {transform_indices = @transform_1, window_bounds = array<i64: 16, 128>}, {transform_indices = @transform_2, window_bounds = array<i64: 16, 256>}]} {
    %c0 = arith.constant 0 : index
    %c0_0 = arith.constant 0 : index
    %0 = vector.load %arg1[%c0, %c0_0] : memref<16x128xf32, #tpu.memory_space<vmem>>, vector<16x128xf32>
    %1 = arith.mulf %0, %0 : vector<16x128xf32>
    %cst = arith.constant dense<0.000000e+00> : vector<16xf32>
    %2 = vector.multi_reduction <add>, %1, %cst [1] : vector<16x128xf32> to vector<16xf32>
    %3 = vector.shape_cast %2 : vector<16xf32> to vector<16x1xf32>
    %4 = math.sqrt %3 : vector<16x1xf32>
    %cst_1 = arith.constant 9.99999996E-13 : f32
    %5 = vector.broadcast %cst_1 : f32 to vector<16x1xf32>
    %6 = arith.maximumf %4, %5 : vector<16x1xf32>
    %cst_2 = arith.constant 1.000000e+00 : f32
    %7 = vector.broadcast %cst_2 : f32 to vector<16x1xf32>
    %8 = arith.divf %7, %6 : vector<16x1xf32>
    %9 = vector.broadcast %8 : vector<16x1xf32> to vector<16x128xf32>
    %10 = arith.mulf %0, %9 : vector<16x128xf32>
    %c0_3 = arith.constant 0 : index
    %c0_4 = arith.constant 0 : index
    %11 = vector.load %arg3[%c0_3, %c0_4] : memref<16x256xf32, #tpu.memory_space<vmem>>, vector<16x128xf32>
    tpu.vector_store %arg3[%c0_3, %c0_4], %10 {strides = array<i32>} : memref<16x256xf32, #tpu.memory_space<vmem>>, vector<16x128xf32>,
    %c0_5 = arith.constant 0 : index
    %c0_6 = arith.constant 0 : index
    %12 = vector.load %arg2[%c0_5, %c0_6] : memref<16x128xf32, #tpu.memory_space<vmem>>, vector<16x128xf32>
    %13 = arith.mulf %12, %12 : vector<16x128xf32>
    %cst_7 = arith.constant dense<0.000000e+00> : vector<16xf32>
    %14 = vector.multi_reduction <add>, %13, %cst_7 [1] : vector<16x128xf32> to vector<16xf32>
    %15 = vector.shape_cast %14 : vector<16xf32> to vector<16x1xf32>
    %16 = math.sqrt %15 : vector<16x1xf32>
    %cst_8 = arith.constant 9.99999996E-13 : f32
    %17 = vector.broadcast %cst_8 : f32 to vector<16x1xf32>
    %18 = arith.maximumf %16, %17 : vector<16x1xf32>
    %cst_9 = arith.constant 1.000000e+00 : f32
    %19 = vector.broadcast %cst_9 : f32 to vector<16x1xf32>
    %20 = arith.divf %19, %18 : vector<16x1xf32>
    %21 = vector.broadcast %20 : vector<16x1xf32> to vector<16x128xf32>
    %22 = arith.mulf %12, %21 : vector<16x128xf32>
    %c0_10 = arith.constant 0 : index
    %c128 = arith.constant 128 : index
    %23 = vector.load %arg3[%c0_10, %c128] : memref<16x256xf32, #tpu.memory_space<vmem>>, vector<16x128xf32>
    tpu.vector_store %arg3[%c0_10, %c128], %22 {strides = array<i32>} : memref<16x256xf32, #tpu.memory_space<vmem>>, vector<16x128xf32>,
    return
  }
  func.func @transform_0(%arg0: i32) -> (i32, i32) {
    %c0_i32 = arith.constant 0 : i32
    %c0_i32_0 = arith.constant 0 : i32
    return %arg0, %c0_i32 : i32, i32
  }
  func.func @transform_1(%arg0: i32) -> (i32, i32) {
    %c0_i32 = arith.constant 0 : i32
    %c0_i32_0 = arith.constant 0 : i32
    return %arg0, %c0_i32 : i32, i32
  }
  func.func @transform_2(%arg0: i32) -> (i32, i32) {
    %c0_i32 = arith.constant 0 : i32
    %c0_i32_0 = arith.constant 0 : i32
    return %arg0, %c0_i32 : i32, i32
  }
}

</mosaic_0001>

<llo_original>
// kernel: tpu_custom_call.1
$region0: #{tpu_custom_call.1}
  #allocation0 [shape = 'u32[]', space=smem, size = 0x4, offset = 0x4, fixed_abs, tag = 'smem constant byte address 0x4 - core index']
  #allocation1 [shape = 'u32[144,128]{1,0:T(1,128)}', space=vmem, size = 0x12000, scoped, tag = 'internal scratch']
  %s0 = inlined_call_operand.hbm [shape: f32[16,128], index: 0, kind: input, shape index: {}]
  %s1 = inlined_call_operand.hbm [shape: f32[16,128], index: 1, kind: input, shape index: {}]
  %s2 = inlined_call_operand.hbm [shape: f32[16,256], index: 2, kind: output, shape index: {}]
  %s3 = sld [smem:[#allocation0]]
  $region26: #{tpu_custom_call.1} parent=0
    _
  %s5 = ssub.s32 1, %s3
  %s6 = scalar_select 0, %s5, %s3
  $region1: #{tpu_custom_call.1} parent=0
    #allocation2 [shape = 'u8[8192]{0}', space=vmem, size = 0x2000, scoped, tag = 'input window, operand 0, single buffered']
    #allocation3 [shape = 's32[1]{0}', space=sflag, size = 0x4, scoped, tag = 'scoped memory for tpu_custom_call.1']
    #allocation4 [shape = 's32[1]{0}', space=sflag, size = 0x4, scoped, tag = 'scoped memory for tpu_custom_call.1']
    #allocation5 [shape = 'u8[8192]{0}', space=vmem, size = 0x2000, scoped, tag = 'input window, operand 1, single buffered']
    #allocation6 [shape = 's32[1]{0}', space=sflag, size = 0x4, scoped, tag = 'scoped memory for tpu_custom_call.1']
    #allocation7 [shape = 'u8[16384]{0}', space=vmem, size = 0x4000, scoped, tag = 'output window, operand 0, single buffered']
    %7 = vsyncpa [#allocation3], 0
    %8 = vsyncpa [#allocation6], 0
    %9 = vsyncpa [#allocation4], 0
    // Predicated region
    $region2: #{tpu_custom_call.1} parent=1 // pred_check
      _
    $region3: #{tpu_custom_call.1} parent=1 // pred_check_branch
      %11 = sbr.rel (0) target = $region5
    $region4: #{tpu_custom_call.1} parent=1 // pred_region
      %s13 = ssub.s32 256, 256
      %14 = vsyncadd [#allocation3], %s13
      %s15 = sshll.u32 [#allocation2], 4
      %s16 = int_to_ptr.vmem [resolvable:$true] %s15
      %21 = dma.hbm_to_vmem [thread:$0]  %s0, 256, %s16, [#allocation3], 128, 128, 8
    $region5: #{tpu_custom_call.1} parent=1 // pred_fallthru
      _
    // Predicated region
    $region6: #{tpu_custom_call.1} parent=1 // pred_check
      _
    $region7: #{tpu_custom_call.1} parent=1 // pred_check_branch
      %23 = sbr.rel (0) target = $region9
    $region8: #{tpu_custom_call.1} parent=1 // pred_region
      %s25 = ssub.s32 256, 256
      %26 = vsyncadd [#allocation6], %s25
      %s27 = sshll.u32 [#allocation5], 4
      %s28 = int_to_ptr.vmem [resolvable:$true] %s27
      %33 = dma.hbm_to_vmem [thread:$0]  %s1, 256, %s28, [#allocation6], 128, 128, 8
    $region9: #{tpu_custom_call.1} parent=1 // pred_fallthru
      _
    // Predicated region
    $region10: #{tpu_custom_call.1} parent=1 // pred_check
      _
    $region11: #{tpu_custom_call.1} parent=1 // pred_check_branch
      %35 = sbr.rel (0) target = $region13
    $region12: #{tpu_custom_call.1} parent=1 // pred_region
      %36 = dma.done [#allocation3], 256
    $region13: #{tpu_custom_call.1} parent=1 // pred_fallthru
      _
    // Predicated region
    $region14: #{tpu_custom_call.1} parent=1 // pred_check
      _
    $region15: #{tpu_custom_call.1} parent=1 // pred_check_branch
      %38 = sbr.rel (0) target = $region17
    $region16: #{tpu_custom_call.1} parent=1 // pred_region
      %39 = dma.done [#allocation6], 256
    $region17: #{tpu_custom_call.1} parent=1 // pred_fallthru
      _
    %v40 = vld [vmem:[#allocation2] sm:$0xff]
    %v41 = vld [vmem:[#allocation2 + $0x8] sm:$0xff]
    %v42 = vmul.f32 %v40, %v40
    %v43 = vmul.f32 %v41, %v41
    %44 = vadd.xlane.f32.xlu0 %v42
    %v45 = vpop.xlane.xlu0 %44
    %46 = vadd.xlane.f32.xlu0 %v43
    %v47 = vpop.xlane.xlu0 %46
    %v48 = vrsqrt.pop %v45
    %v49 = vmul.f32 %v45, %v48
    %vm50 = vcmp.eq.f32.partialorder %v45, inf
    %v51 = vsel %vm50, %v45, %v49
    %vm52 = vcmp.eq.f32.partialorder %v45, 0.0
    %v53 = vand.u32 %v45, 2147483648
    %v54 = vsel %vm52, %v53, %v51
    %v55 = vrsqrt.pop %v47
    %v56 = vmul.f32 %v47, %v55
    %vm57 = vcmp.eq.f32.partialorder %v47, inf
    %v58 = vsel %vm57, %v47, %v56
    %vm59 = vcmp.eq.f32.partialorder %v47, 0.0
    %v60 = vand.u32 %v47, 2147483648
    %v61 = vsel %vm59, %v60, %v58
    %v62 = vmax.f32 %v54, 1e-12
    %v63 = vmax.f32 %v61, 1e-12
    %v64 = vrcp.pop %v62
    %v65 = vmul.f32 1.0, %v64
    %v66 = vrcp.pop %v63
    %v67 = vmul.f32 1.0, %v66
    %v68 = vmul.f32 %v40, %v65
    %v69 = vmul.f32 %v41, %v67
    %70 = vst [vmem:[#allocation7] sm:$0xff] %v68
    %71 = vst [vmem:[#allocation7 + $0x10] sm:$0xff] %v69
    %v72 = vld [vmem:[#allocation5] sm:$0xff]
    %v73 = vld [vmem:[#allocation5 + $0x8] sm:$0xff]
    %v74 = vmul.f32 %v72, %v72
    %v75 = vmul.f32 %v73, %v73
    %76 = vadd.xlane.f32.xlu0 %v74
    %v77 = vpop.xlane.xlu0 %76
    %78 = vadd.xlane.f32.xlu0 %v75
    %v79 = vpop.xlane.xlu0 %78
    %v80 = vrsqrt.pop %v77
    %v81 = vmul.f32 %v77, %v80
    %vm82 = vcmp.eq.f32.partialorder %v77, inf
    %v83 = vsel %vm82, %v77, %v81
    %vm84 = vcmp.eq.f32.partialorder %v77, 0.0
    %v85 = vand.u32 %v77, 2147483648
    %v86 = vsel %vm84, %v85, %v83
    %v87 = vrsqrt.pop %v79
    %v88 = vmul.f32 %v79, %v87
    %vm89 = vcmp.eq.f32.partialorder %v79, inf
    %v90 = vsel %vm89, %v79, %v88
    %vm91 = vcmp.eq.f32.partialorder %v79, 0.0
    %v92 = vand.u32 %v79, 2147483648
    %v93 = vsel %vm91, %v92, %v90
    %v94 = vmax.f32 %v86, 1e-12
    %v95 = vmax.f32 %v93, 1e-12
    %v96 = vrcp.pop %v94
    %v97 = vmul.f32 1.0, %v96
    %v98 = vrcp.pop %v95
    %v99 = vmul.f32 1.0, %v98
    %v100 = vmul.f32 %v72, %v97
    %v101 = vmul.f32 %v73, %v99
    %102 = vst [vmem:[#allocation7 + $0x8] sm:$0xff] %v100
    %103 = vst [vmem:[#allocation7 + $0x18] sm:$0xff] %v101
    // Predicated region
    $region18: #{tpu_custom_call.1} parent=1 // pred_check
      _
    $region19: #{tpu_custom_call.1} parent=1 // pred_check_branch
      %105 = sbr.rel (0) target = $region21
    $region20: #{tpu_custom_call.1} parent=1 // pred_region
      %s107 = ssub.s32 512, 512
      %108 = vsyncadd [#allocation4], %s107
      %s109 = sshll.u32 [#allocation7], 4
      %s110 = int_to_ptr.vmem [resolvable:$true] %s109
      %115 = dma.vmem_to_hbm [thread:$0]  %s110, 512, %s2, [#allocation4], 256, 256, 16
    $region21: #{tpu_custom_call.1} parent=1 // pred_fallthru
      _
    // Predicated region
    $region22: #{tpu_custom_call.1} parent=1 // pred_check
      _
    $region23: #{tpu_custom_call.1} parent=1 // pred_check_branch
      %117 = sbr.rel (0) target = $region25
    $region24: #{tpu_custom_call.1} parent=1 // pred_region
      %118 = dma.done [#allocation4], 512
    $region25: #{tpu_custom_call.1} parent=1 // pred_fallthru
      _
    %119 = vsyncpa [#allocation3], 1
    %120 = vsyncpa [#allocation6], 1
    %121 = vsyncpa [#allocation4], 1

</llo_original>
